<compile_context>
chip_gen: v6e
topology: v6e:2x2x1
jax: 0.10.0
libtpu: 0.0.40
codegen_flags: <defaults>
</compile_context>

<pallas_src>
import functools

import jax
import jax.numpy as jnp
from jax import lax
from jax.experimental import pallas as pl
from jax.experimental.pallas import tpu as pltpu


_LANE = 128
_SUBLANE = 8
_MAX_ROW_TILE = 512        # ~85% of HBM roofline per measured tile sweep; fills MXU M dim
_SLACK_BYTES = 4 << 20     # headroom for Mosaic internal scratch


def _round_up(x, m):
    return ((x + m - 1) // m) * m


def _cdiv(a, b):
    return (a + b - 1) // b


def _vmem_cap_bytes():
    """~80% of physical VMEM for this generation (v5e/v6e ~102 MiB, v7x ~51 MiB)."""
    try:
        info = pltpu.get_tpu_info()
        phys = int(getattr(info, "vmem_capacity_bytes", 0))
        if phys > 0:
            return (phys * 4) // 5
    except Exception:
        pass
    return 64 << 20  # conservative fallback, valid on every generation


def prepare_embedding_table(table, vmem_cap=None):
    """One-time parameter prep: f32 cast + zero-pad to lane-dense (128) tiles.

    Hoisted out of the per-call path so the forward pass does not pay a full
    HBM read+write of the table on every call.  Also picks the F (vocab) block
    size: the whole padded table if it fits the VMEM budget as a single
    resident, single-buffered operand; otherwise an F tile that streams.
    """
    F, E = table.shape
    if vmem_cap is None:
        vmem_cap = _vmem_cap_bytes()
    E_pad = _round_up(E, _LANE)
    F_pad = _round_up(F, _LANE)

    # Budget check with the worst-case row tile:
    #   resident table (single-buffered) + (tile, F_pad) f32 counts/one-hot temp
    #   + double-buffered idx/out tiles + slack.
    tile = _MAX_ROW_TILE
    fixed = 2 * (tile * _LANE * 4 + tile * E_pad * 4) + _SLACK_BYTES
    resident_cost = F_pad * E_pad * 4 + tile * F_pad * 4
    if fixed + resident_cost <= vmem_cap:
        f_block = F_pad
    else:
        # Stream the table in (f_block, E_pad) chunks (double-buffered) and bound
        # the (tile, f_block) one-hot temp.
        budget = max(vmem_cap - fixed, 8 << 20)
        per_f_row = 2 * E_pad * 4 + tile * 4
        f_block = max(_LANE, (budget // per_f_row) // _LANE * _LANE)
        f_block = min(f_block, F_pad)
        F_pad = _round_up(F_pad, f_block)   # guarantee the F grid divides evenly

    table_p = jnp.pad(table.astype(jnp.float32), ((0, F_pad - F), (0, E_pad - E)))
    return {
        "table": table_p,
        "F": F,
        "E": E,
        "F_pad": F_pad,
        "E_pad": E_pad,
        "f_block": int(f_block),
        "vmem_cap": int(vmem_cap),
    }


def _choose_row_tiling(rows, max_tile=_MAX_ROW_TILE):
    """Row tile (multiple of 8) and the padded row count it divides.

    When there is more than one sublane's worth of rows, force >= 2 grid steps
    so the "parallel" row axis can shard across both TensorCores on 2-TC parts
    (v7x); the extra grid step (~0.35 us) is negligible on single-TC parts.
    """
    rows8 = _round_up(max(rows, 1), _SUBLANE)
    if rows8 <= _SUBLANE:
        return rows8, rows8
    tile = min(max_tile, _round_up(_cdiv(rows8, 2), _SUBLANE))
    return tile, _round_up(rows8, tile)


def _mosaic_params(table_block_bytes, table_resident, idx_tile_bytes,
                   out_tile_bytes, temp_bytes, vmem_cap):
    table_cost = (1 if table_resident else 2) * table_block_bytes
    needed = (table_cost + 2 * (idx_tile_bytes + out_tile_bytes)
              + temp_bytes + _SLACK_BYTES)
    # Floor at 16 MiB (<= every generation's default scoped limit), cap at ~80%
    # of physical VMEM so the compiler keeps internal scratch headroom.
    limit = int(min(max(needed, 16 << 20), vmem_cap))
    return pltpu.CompilerParams(
        dimension_semantics=("parallel", "arbitrary"),
        vmem_limit_bytes=limit,
    )


def _embedding_mean_kernel(idx_ref, table_ref, out_ref, *, L, f_block):
    """out[b,:] = (1/L) * sum_l table[idx[b,l],:]  via counts @ table on the MXU.

    Grid = (row tiles, F blocks).  out_ref keeps the same block index across the
    F axis, so it is the accumulator; counts are built only for the current F block.
    """
    k = pl.program_id(1)

    @pl.when(k == 0)
    def _init():
        out_ref[...] = jnp.zeros_like(out_ref)

    tb = idx_ref.shape[0]
    idx = idx_ref[...]                                          # (tb, L) int32, one load
    f_iota = lax.broadcasted_iota(jnp.int32, (tb, f_block), 1) + k * f_block

    if L <= 32:
        # Small L: static unroll (demo path).
        counts = jnp.zeros((tb, f_block), jnp.float32)
        for l in range(L):
            counts = counts + (f_iota == idx[:, l:l + 1]).astype(jnp.float32)
    else:
        # Large L: bounded live ranges / program size with a modest unroll.
        def body(l, c):
            col = lax.dynamic_slice_in_dim(idx, l, 1, axis=1)
            return c + (f_iota == col).astype(jnp.float32)
        counts = lax.fori_loop(0, L, body,
                               jnp.zeros((tb, f_block), jnp.float32), unroll=8)

    out_ref[...] += jnp.dot(counts, table_ref[...],
                            preferred_element_type=jnp.float32)

    @pl.when(k == pl.num_programs(1) - 1)
    def _finalize():
        out_ref[...] = out_ref[...] * jnp.float32(1.0 / L)


def _embedding_gather_kernel(idx_ref, table_ref, out_ref, *, f_block):
    """out[n,:] = table[idx[n],:] via a one-hot matmul (lane-dense output)."""
    k = pl.program_id(1)

    @pl.when(k == 0)
    def _init():
        out_ref[...] = jnp.zeros_like(out_ref)

    tn = idx_ref.shape[0]
    f_iota = lax.broadcasted_iota(jnp.int32, (tn, f_block), 1) + k * f_block
    one_hot = (f_iota == idx_ref[...]).astype(jnp.float32)      # (tn,1) bcast over lanes
    out_ref[...] += jnp.dot(one_hot, table_ref[...],
                            preferred_element_type=jnp.float32)


def embedding_unit_layer(X, table, meaning=True):
    """JAX/Pallas equivalent of EmbeddingUnitLayer.forward.

    X:     (B, L) integer indices.
    table: either the raw (F, E) weight matrix or (preferred) the dict returned
           by prepare_embedding_table — the prepared form avoids re-padding the
           table on every call.

    NOTE: out-of-range indices produce an all-zero embedding rather than raising
    like torch.nn.Embedding.
    """
    if not isinstance(table, dict):
        table = prepare_embedding_table(table)
    tbl = table["table"]
    F, E = table["F"], table["E"]
    F_pad, E_pad, f_block = table["F_pad"], table["E_pad"], table["f_block"]
    vmem_cap = table["vmem_cap"]
    n_f_blocks = F_pad // f_block
    table_resident = n_f_blocks == 1

    if table_resident:
        # Constant block index across the whole grid -> single-buffer the table.
        table_spec = pl.BlockSpec((f_block, E_pad), lambda i, k: (k, 0),
                                  pipeline_mode=pl.Buffered(1))
    else:
        table_spec = pl.BlockSpec((f_block, E_pad), lambda i, k: (k, 0))

    B, L = X.shape

    if meaning:
        tile, rows_pad = _choose_row_tiling(B)
        X_p = jnp.pad(X.astype(jnp.int32), ((0, rows_pad - B), (0, 0)))
        kernel = functools.partial(_embedding_mean_kernel, L=L, f_block=f_block)
        idx_tile_bytes = tile * _round_up(L, _LANE) * 4   # lane-layout footprint
        out = pl.pallas_call(
            kernel,
            out_shape=jax.ShapeDtypeStruct((rows_pad, E_pad), jnp.float32),
            grid=(rows_pad // tile, n_f_blocks),
            in_specs=[
                pl.BlockSpec((tile, L), lambda i, k: (i, 0)),
                table_spec,
            ],
            out_specs=pl.BlockSpec((tile, E_pad), lambda i, k: (i, 0)),
            compiler_params=_mosaic_params(
                f_block * E_pad * 4, table_resident,
                idx_tile_bytes, tile * E_pad * 4, tile * f_block * 4, vmem_cap),
        )(X_p, tbl)
        return out[:B, :E]
    else:
        N = B * L
        tile, rows_pad = _choose_row_tiling(N)
        X_flat = jnp.pad(X.reshape(-1, 1).astype(jnp.int32),
                         ((0, rows_pad - N), (0, 0)))
        kernel = functools.partial(_embedding_gather_kernel, f_block=f_block)
        # A (tile, 1) int32 block still occupies a full 128-lane VMEM layout.
        idx_tile_bytes = tile * _LANE * 4
        out = pl.pallas_call(
            kernel,
            out_shape=jax.ShapeDtypeStruct((rows_pad, E_pad), jnp.float32),
            grid=(rows_pad // tile, n_f_blocks),
            in_specs=[
                pl.BlockSpec((tile, 1), lambda i, k: (i, 0)),
                table_spec,
            ],
            out_specs=pl.BlockSpec((tile, E_pad), lambda i, k: (i, 0)),
            compiler_params=_mosaic_params(
                f_block * E_pad * 4, table_resident,
                idx_tile_bytes, tile * E_pad * 4, tile * f_block * 4, vmem_cap),
        )(X_flat, tbl)
        return out[:N, :E].reshape(B, L, E)


if __name__ == "__main__":
    key = jax.random.PRNGKey(0)
    k_w, k_x = jax.random.split(key)

    # Module params (torch.nn.Embedding(features_size, embedding_size),
    # weights ~ Normal(0, 0.0001)).
    features_size, embedding_size = 100, 32
    B, L = 4, 8

    table = (0.0001 * jax.random.normal(k_w, (features_size, embedding_size))
             ).astype(jnp.float32)
    X = jax.random.randint(k_x, (B, L), 0, features_size, dtype=jnp.int32)

    # One-time parameter prep (pads/casts the table once; reused by every call).
    prepared = prepare_embedding_table(table)

    # meaning=True path (mean over dim=1), the hot path of the module.
    out_mean = jax.block_until_ready(embedding_unit_layer(X, prepared, meaning=True))
    ref_mean = jnp.mean(table[X], axis=1)
    assert out_mean.shape == (B, embedding_size)
    assert jnp.allclose(out_mean, ref_mean, atol=1e-6, rtol=1e-5)

    # meaning=False path (raw gather).
    out_full = jax.block_until_ready(embedding_unit_layer(X, prepared, meaning=False))
    ref_full = table[X]
    assert out_full.shape == (B, L, embedding_size)
    assert jnp.allclose(out_full, ref_full, atol=1e-6, rtol=1e-5)

    print("KERNEL_OK")
</pallas_src>

<mosaic_0001>
module attributes {stable_mosaic.version = 11 : i64} {
  func.func @_embedding_mean_kernel(%arg0: i32, %arg1: i32, %arg2: memref<8x8xi32, #tpu.memory_space<vmem>>, %arg3: memref<128x128xf32, #tpu.memory_space<vmem>>, %arg4: memref<8x128xf32, #tpu.memory_space<vmem>>) attributes {dimension_semantics = [#tpu.dimension_semantics<parallel>, #tpu.dimension_semantics<arbitrary>], iteration_bounds = array<i64: 1, 1>, scalar_prefetch = 0 : i64, scratch_operands = 0 : i64, tpu.core_type = #tpu.core_type<tc>, window_params = [{transform_indices = @transform_0, window_bounds = array<i64: 8, 8>}, {pipeline_mode = #tpu.pipeline_mode<synchronous>, transform_indices = @transform_1, window_bounds = array<i64: 128, 128>}, {transform_indices = @transform_2, window_bounds = array<i64: 8, 128>}]} {
    %c0_i32 = arith.constant 0 : i32
    %0 = arith.cmpi eq, %arg1, %c0_i32 : i32
    %1 = arith.extui %0 : i1 to i32
    %c0_i32_0 = arith.constant 0 : i32
    %2 = arith.cmpi ne, %1, %c0_i32_0 : i32
    scf.if %2 {
      %cst_11 = arith.constant 0.000000e+00 : f32
      %65 = vector.broadcast %cst_11 : f32 to vector<8x128xf32>
      %c0_12 = arith.constant 0 : index
      %c0_13 = arith.constant 0 : index
      %66 = vector.load %arg4[%c0_12, %c0_13] : memref<8x128xf32, #tpu.memory_space<vmem>>, vector<8x128xf32>
      tpu.vector_store %arg4[%c0_12, %c0_13], %65 {strides = array<i32>} : memref<8x128xf32, #tpu.memory_space<vmem>>, vector<8x128xf32>,
    } else {
    }
    %c0 = arith.constant 0 : index
    %c0_1 = arith.constant 0 : index
    %3 = vector.load %arg2[%c0, %c0_1] : memref<8x8xi32, #tpu.memory_space<vmem>>, vector<8x8xi32>
    %4 = tpu.iota {dimensions = array<i32: 1>} : vector<8x128xi32>
    %c128_i32 = arith.constant 128 : i32
    %5 = arith.muli %arg1, %c128_i32 : i32
    %6 = vector.broadcast %5 : i32 to vector<8x128xi32>
    %7 = arith.addi %4, %6 : vector<8x128xi32>
    %cst = arith.constant 0.000000e+00 : f32
    %8 = vector.broadcast %cst : f32 to vector<8x128xf32>
    %9 = vector.extract_strided_slice %3 {offsets = [0, 0], sizes = [8, 1], strides = [1, 1]} : vector<8x8xi32> to vector<8x1xi32>
    %10 = vector.broadcast %9 : vector<8x1xi32> to vector<8x128xi32>
    %11 = arith.cmpi eq, %7, %10 : vector<8x128xi32>
    %12 = arith.extui %11 : vector<8x128xi1> to vector<8x128xi32>
    %13 = arith.sitofp %12 : vector<8x128xi32> to vector<8x128xf32>
    %14 = arith.addf %8, %13 : vector<8x128xf32>
    %15 = vector.extract_strided_slice %3 {offsets = [0, 1], sizes = [8, 1], strides = [1, 1]} : vector<8x8xi32> to vector<8x1xi32>
    %16 = vector.broadcast %15 : vector<8x1xi32> to vector<8x128xi32>
    %17 = arith.cmpi eq, %7, %16 : vector<8x128xi32>
    %18 = arith.extui %17 : vector<8x128xi1> to vector<8x128xi32>
    %19 = arith.sitofp %18 : vector<8x128xi32> to vector<8x128xf32>
    %20 = arith.addf %14, %19 : vector<8x128xf32>
    %21 = vector.extract_strided_slice %3 {offsets = [0, 2], sizes = [8, 1], strides = [1, 1]} : vector<8x8xi32> to vector<8x1xi32>
    %22 = vector.broadcast %21 : vector<8x1xi32> to vector<8x128xi32>
    %23 = arith.cmpi eq, %7, %22 : vector<8x128xi32>
    %24 = arith.extui %23 : vector<8x128xi1> to vector<8x128xi32>
    %25 = arith.sitofp %24 : vector<8x128xi32> to vector<8x128xf32>
    %26 = arith.addf %20, %25 : vector<8x128xf32>
    %27 = vector.extract_strided_slice %3 {offsets = [0, 3], sizes = [8, 1], strides = [1, 1]} : vector<8x8xi32> to vector<8x1xi32>
    %28 = vector.broadcast %27 : vector<8x1xi32> to vector<8x128xi32>
    %29 = arith.cmpi eq, %7, %28 : vector<8x128xi32>
    %30 = arith.extui %29 : vector<8x128xi1> to vector<8x128xi32>
    %31 = arith.sitofp %30 : vector<8x128xi32> to vector<8x128xf32>
    %32 = arith.addf %26, %31 : vector<8x128xf32>
    %33 = vector.extract_strided_slice %3 {offsets = [0, 4], sizes = [8, 1], strides = [1, 1]} : vector<8x8xi32> to vector<8x1xi32>
    %34 = vector.broadcast %33 : vector<8x1xi32> to vector<8x128xi32>
    %35 = arith.cmpi eq, %7, %34 : vector<8x128xi32>
    %36 = arith.extui %35 : vector<8x128xi1> to vector<8x128xi32>
    %37 = arith.sitofp %36 : vector<8x128xi32> to vector<8x128xf32>
    %38 = arith.addf %32, %37 : vector<8x128xf32>
    %39 = vector.extract_strided_slice %3 {offsets = [0, 5], sizes = [8, 1], strides = [1, 1]} : vector<8x8xi32> to vector<8x1xi32>
    %40 = vector.broadcast %39 : vector<8x1xi32> to vector<8x128xi32>
    %41 = arith.cmpi eq, %7, %40 : vector<8x128xi32>
    %42 = arith.extui %41 : vector<8x128xi1> to vector<8x128xi32>
    %43 = arith.sitofp %42 : vector<8x128xi32> to vector<8x128xf32>
    %44 = arith.addf %38, %43 : vector<8x128xf32>
    %45 = vector.extract_strided_slice %3 {offsets = [0, 6], sizes = [8, 1], strides = [1, 1]} : vector<8x8xi32> to vector<8x1xi32>
    %46 = vector.broadcast %45 : vector<8x1xi32> to vector<8x128xi32>
    %47 = arith.cmpi eq, %7, %46 : vector<8x128xi32>
    %48 = arith.extui %47 : vector<8x128xi1> to vector<8x128xi32>
    %49 = arith.sitofp %48 : vector<8x128xi32> to vector<8x128xf32>
    %50 = arith.addf %44, %49 : vector<8x128xf32>
    %51 = vector.extract_strided_slice %3 {offsets = [0, 7], sizes = [8, 1], strides = [1, 1]} : vector<8x8xi32> to vector<8x1xi32>
    %52 = vector.broadcast %51 : vector<8x1xi32> to vector<8x128xi32>
    %53 = arith.cmpi eq, %7, %52 : vector<8x128xi32>
    %54 = arith.extui %53 : vector<8x128xi1> to vector<8x128xi32>
    %55 = arith.sitofp %54 : vector<8x128xi32> to vector<8x128xf32>
    %56 = arith.addf %50, %55 : vector<8x128xf32>
    %c0_2 = arith.constant 0 : index
    %c0_3 = arith.constant 0 : index
    %57 = vector.load %arg4[%c0_2, %c0_3] : memref<8x128xf32, #tpu.memory_space<vmem>>, vector<8x128xf32>
    %c0_4 = arith.constant 0 : index
    %c0_5 = arith.constant 0 : index
    %58 = vector.load %arg3[%c0_4, %c0_5] : memref<128x128xf32, #tpu.memory_space<vmem>>, vector<128x128xf32>
    %cst_6 = arith.constant dense<0.000000e+00> : vector<8x128xf32>
    %59 = tpu.matmul %56, %58, %cst_6 {dimension_numbers = #tpu.dot_dimension_numbers<[1], [0], [0], [1], [0, 0, 1, 1], [], []>} : vector<8x128xf32>, vector<128x128xf32>, vector<8x128xf32> -> vector<8x128xf32>
    %60 = arith.addf %57, %59 : vector<8x128xf32>
    %c0_7 = arith.constant 0 : index
    %c0_8 = arith.constant 0 : index
    %61 = vector.load %arg4[%c0_7, %c0_8] : memref<8x128xf32, #tpu.memory_space<vmem>>, vector<8x128xf32>
    tpu.vector_store %arg4[%c0_7, %c0_8], %60 {strides = array<i32>} : memref<8x128xf32, #tpu.memory_space<vmem>>, vector<8x128xf32>,
    %c0_i32_9 = arith.constant 0 : i32
    %62 = arith.cmpi eq, %arg1, %c0_i32_9 : i32
    %63 = arith.extui %62 : i1 to i32
    %c0_i32_10 = arith.constant 0 : i32
    %64 = arith.cmpi ne, %63, %c0_i32_10 : i32
    scf.if %64 {
      %c0_11 = arith.constant 0 : index
      %c0_12 = arith.constant 0 : index
      %65 = vector.load %arg4[%c0_11, %c0_12] : memref<8x128xf32, #tpu.memory_space<vmem>>, vector<8x128xf32>
      %cst_13 = arith.constant 1.250000e-01 : f32
      %66 = vector.broadcast %cst_13 : f32 to vector<8x128xf32>
      %67 = arith.mulf %65, %66 : vector<8x128xf32>
      %c0_14 = arith.constant 0 : index
      %c0_15 = arith.constant 0 : index
      %68 = vector.load %arg4[%c0_14, %c0_15] : memref<8x128xf32, #tpu.memory_space<vmem>>, vector<8x128xf32>
      tpu.vector_store %arg4[%c0_14, %c0_15], %67 {strides = array<i32>} : memref<8x128xf32, #tpu.memory_space<vmem>>, vector<8x128xf32>,
    } else {
    }
    return
  }
  func.func @transform_0(%arg0: i32, %arg1: i32) -> (i32, i32) {
    %c0_i32 = arith.constant 0 : i32
    %c0_i32_0 = arith.constant 0 : i32
    return %arg0, %c0_i32 : i32, i32
  }
  func.func @transform_1(%arg0: i32, %arg1: i32) -> (i32, i32) {
    %c0_i32 = arith.constant 0 : i32
    %c0_i32_0 = arith.constant 0 : i32
    return %arg1, %c0_i32 : i32, i32
  }
  func.func @transform_2(%arg0: i32, %arg1: i32) -> (i32, i32) {
    %c0_i32 = arith.constant 0 : i32
    %c0_i32_0 = arith.constant 0 : i32
    return %arg0, %c0_i32 : i32, i32
  }
}

</mosaic_0001>

<llo_original>
// kernel: tpu_custom_call.1
$region0: #{tpu_custom_call.1}
  #allocation0 [shape = 'u32[]', space=smem, size = 0x4, offset = 0x4, fixed_abs, tag = 'smem constant byte address 0x4 - core index']
  #allocation1 [shape = 'u32[144,128]{1,0:T(1,128)}', space=vmem, size = 0x12000, scoped, tag = 'internal scratch']
  %s0 = inlined_call_operand.hbm [shape: s32[8,8], index: 0, kind: input, shape index: {}]
  %s1 = inlined_call_operand.hbm [shape: f32[128,128], index: 1, kind: input, shape index: {}]
  %s2 = inlined_call_operand.hbm [shape: f32[8,128], index: 2, kind: output, shape index: {}]
  %s3 = sld [smem:[#allocation0]]
  $region34: #{tpu_custom_call.1} parent=0
    _
  %s5 = ssub.s32 1, %s3
  %s6 = scalar_select 0, %s5, %s3
  $region1: #{tpu_custom_call.1} parent=0
    #allocation2 [shape = 'u8[4096]{0}', space=vmem, size = 0x1000, scoped, tag = 'input window, operand 0, single buffered']
    #allocation3 [shape = 's32[1]{0}', space=sflag, size = 0x4, scoped, tag = 'scoped memory for tpu_custom_call.1']
    #allocation4 [shape = 's32[1]{0}', space=sflag, size = 0x4, scoped, tag = 'scoped memory for tpu_custom_call.1']
    #allocation5 [shape = 'u8[65536]{0}', space=vmem, size = 0x10000, scoped, tag = 'input window, operand 1, single buffered']
    #allocation6 [shape = 's32[1]{0}', space=sflag, size = 0x4, scoped, tag = 'scoped memory for tpu_custom_call.1']
    #allocation7 [shape = 'u8[4096]{0}', space=vmem, size = 0x1000, scoped, tag = 'output window, operand 0, single buffered']
    %7 = vsyncpa [#allocation3], 0
    %8 = vsyncpa [#allocation6], 0
    %9 = vsyncpa [#allocation4], 0
    // Predicated region
    $region2: #{tpu_custom_call.1} parent=1 // pred_check
      _
    $region3: #{tpu_custom_call.1} parent=1 // pred_check_branch
      %11 = sbr.rel (0) target = $region5
    $region4: #{tpu_custom_call.1} parent=1 // pred_region
      %s13 = ssub.s32 128, 128
      %14 = vsyncadd [#allocation3], %s13
      %s16 = sshll.u32 [#allocation2], 4
      %s17 = int_to_ptr.vmem [resolvable:$true] %s16
      %19 = dma.hbm_to_vmem [thread:$0]  %s0, 128, %s17, [#allocation3]
    $region5: #{tpu_custom_call.1} parent=1 // pred_fallthru
      _
    // Predicated region
    $region6: #{tpu_custom_call.1} parent=1 // pred_check
      _
    $region7: #{tpu_custom_call.1} parent=1 // pred_check_branch
      %21 = sbr.rel (0) target = $region9
    $region8: #{tpu_custom_call.1} parent=1 // pred_region
      %s23 = ssub.s32 2048, 2048
      %24 = vsyncadd [#allocation6], %s23
      %s25 = sshll.u32 [#allocation5], 4
      %s26 = int_to_ptr.vmem [resolvable:$true] %s25
      %31 = dma.hbm_to_vmem [thread:$0]  %s1, 2048, %s26, [#allocation6], 128, 128, 8
    $region9: #{tpu_custom_call.1} parent=1 // pred_fallthru
      _
    // Predicated region
    $region10: #{tpu_custom_call.1} parent=1 // pred_check
      _
    $region11: #{tpu_custom_call.1} parent=1 // pred_check_branch
      %33 = sbr.rel (0) target = $region13
    $region12: #{tpu_custom_call.1} parent=1 // pred_region
      %34 = dma.done [#allocation3], 128
    $region13: #{tpu_custom_call.1} parent=1 // pred_fallthru
      _
    // Predicated region
    $region14: #{tpu_custom_call.1} parent=1 // pred_check
      _
    $region15: #{tpu_custom_call.1} parent=1 // pred_check_branch
      %36 = sbr.rel (0) target = $region17
    $region16: #{tpu_custom_call.1} parent=1 // pred_region
      %37 = dma.done [#allocation6], 2048
    $region17: #{tpu_custom_call.1} parent=1 // pred_fallthru
      _
    %p38 = scmp.eq.s32.totalorder 0, 0
    // Predicated region
    $region18: #{tpu_custom_call.1} parent=1 // pred_check
      %p39 = pneg %p38
    $region19: #{tpu_custom_call.1} parent=1 // pred_check_branch
      %41 = sbr.rel (%p39) target = $region21
    $region20: #{tpu_custom_call.1} parent=1 // pred_region
      %42 = vst [vmem:[#allocation7] sm:$0xff] 0.0
    $region21: #{tpu_custom_call.1} parent=1 // pred_fallthru
      _
    %v43 = vld [vmem:[#allocation2] sm:$0xff]
    %v44 = vlaneseq
    %v45 = vand.u32 %v44, 127
    %s46 = smul.u32 0, 128
    %v47 = vstv %s46
    %v48 = vadd.s32 %v45, %v47
    %49 = vset.pattern.permute.xlu0 0
    %50 = vperm.xlu0 %49, %v43
    %v51 = vpop.permute.xlu0 %50
    %vm52 = vcmp.eq.s32.totalorder %v48, %v51
    %v53 = vsel %vm52, 1, 0
    %v54 = vcvt.s32.f32 %v53
    %v55 = vadd.f32 %v54, 0.0
    %56 = vset.pattern.permute.xlu0 1
    %57 = vperm.xlu0 %56, %v43
    %v58 = vpop.permute.xlu0 %57
    %vm59 = vcmp.eq.s32.totalorder %v48, %v58
    %v60 = vsel %vm59, 1, 0
    %v61 = vcvt.s32.f32 %v60
    %v62 = vadd.f32 %v55, %v61
    %63 = vset.pattern.permute.xlu0 2
    %64 = vperm.xlu0 %63, %v43
    %v65 = vpop.permute.xlu0 %64
    %vm66 = vcmp.eq.s32.totalorder %v48, %v65
    %v67 = vsel %vm66, 1, 0
    %v68 = vcvt.s32.f32 %v67
    %v69 = vadd.f32 %v62, %v68
    %70 = vset.pattern.permute.xlu0 3
    %71 = vperm.xlu0 %70, %v43
    %v72 = vpop.permute.xlu0 %71
    %vm73 = vcmp.eq.s32.totalorder %v48, %v72
    %v74 = vsel %vm73, 1, 0
    %v75 = vcvt.s32.f32 %v74
    %v76 = vadd.f32 %v69, %v75
    %77 = vset.pattern.permute.xlu0 4
    %78 = vperm.xlu0 %77, %v43
    %v79 = vpop.permute.xlu0 %78
    %vm80 = vcmp.eq.s32.totalorder %v48, %v79
    %v81 = vsel %vm80, 1, 0
    %v82 = vcvt.s32.f32 %v81
    %v83 = vadd.f32 %v76, %v82
    %84 = vset.pattern.permute.xlu0 5
    %85 = vperm.xlu0 %84, %v43
    %v86 = vpop.permute.xlu0 %85
    %vm87 = vcmp.eq.s32.totalorder %v48, %v86
    %v88 = vsel %vm87, 1, 0
    %v89 = vcvt.s32.f32 %v88
    %v90 = vadd.f32 %v83, %v89
    %91 = vset.pattern.permute.xlu0 6
    %92 = vperm.xlu0 %91, %v43
    %v93 = vpop.permute.xlu0 %92
    %vm94 = vcmp.eq.s32.totalorder %v48, %v93
    %v95 = vsel %vm94, 1, 0
    %v96 = vcvt.s32.f32 %v95
    %v97 = vadd.f32 %v90, %v96
    %98 = vset.pattern.permute.xlu0 7
    %99 = vperm.xlu0 %98, %v43
    %v100 = vpop.permute.xlu0 %99
    %vm101 = vcmp.eq.s32.totalorder %v48, %v100
    %v102 = vsel %vm101, 1, 0
    %v103 = vcvt.s32.f32 %v102
    %v104 = vadd.f32 %v97, %v103
    %v105 = vld [vmem:[#allocation7] sm:$0xff]
    %v106 = vld [vmem:[#allocation5] sm:$0xff]
    %v107 = vld [vmem:[#allocation5 + $0x8] sm:$0xff]
    %v108 = vld [vmem:[#allocation5 + $0x10] sm:$0xff]
    %v109 = vld [vmem:[#allocation5 + $0x18] sm:$0xff]
    %v110 = vld [vmem:[#allocation5 + $0x20] sm:$0xff]
    %v111 = vld [vmem:[#allocation5 + $0x28] sm:$0xff]
    %v112 = vld [vmem:[#allocation5 + $0x30] sm:$0xff]
    %v113 = vld [vmem:[#allocation5 + $0x38] sm:$0xff]
    %v114 = vld [vmem:[#allocation5 + $0x40] sm:$0xff]
    %v115 = vld [vmem:[#allocation5 + $0x48] sm:$0xff]
    %v116 = vld [vmem:[#allocation5 + $0x50] sm:$0xff]
    %v117 = vld [vmem:[#allocation5 + $0x58] sm:$0xff]
    %v118 = vld [vmem:[#allocation5 + $0x60] sm:$0xff]
    %v119 = vld [vmem:[#allocation5 + $0x68] sm:$0xff]
    %v120 = vld [vmem:[#allocation5 + $0x70] sm:$0xff]
    %v121 = vld [vmem:[#allocation5 + $0x78] sm:$0xff]
    %122 = vmatprep.subr.mxu0 0.0
    %123 = vmatpush1.msra.mxu0 %v121
    %124 = vmatprep.subr.mxu0 0.0
    %125 = vmatpush1.msra.mxu0 %v120
    %126 = vmatprep.subr.mxu0 0.0
    %127 = vmatpush1.msra.mxu0 %v119
    %128 = vmatprep.subr.mxu0 0.0
    %129 = vmatpush1.msra.mxu0 %v118
    %130 = vmatprep.subr.mxu0 0.0
    %131 = vmatpush1.msra.mxu0 %v117
    %132 = vmatprep.subr.mxu0 0.0
    %133 = vmatpush1.msra.mxu0 %v116
    %134 = vmatprep.subr.mxu0 0.0
    %135 = vmatpush1.msra.mxu0 %v115
    %136 = vmatprep.subr.mxu0 0.0
    %137 = vmatpush1.msra.mxu0 %v114
    %138 = vmatprep.subr.mxu0 0.0
    %139 = vmatpush1.msra.mxu0 %v113
    %140 = vmatprep.subr.mxu0 0.0
    %141 = vmatpush1.msra.mxu0 %v112
    %142 = vmatprep.subr.mxu0 0.0
    %143 = vmatpush1.msra.mxu0 %v111
    %144 = vmatprep.subr.mxu0 0.0
    %145 = vmatpush1.msra.mxu0 %v110
    %146 = vmatprep.subr.mxu0 0.0
    %147 = vmatpush1.msra.mxu0 %v109
    %148 = vmatprep.subr.mxu0 0.0
    %149 = vmatpush1.msra.mxu0 %v108
    %150 = vmatprep.subr.mxu0 0.0
    %151 = vmatpush1.msra.mxu0 %v107
    %152 = vmatprep.subr.mxu0 0.0
    %153 = vmatpush1.msra.mxu0 %v106
    %154 = vmatprep.subr.mxu0 0.0
    %155 = vmatpush2.msra.mxu0 0.0
    %156 = vmatprep.subr.mxu0 0.0
    %157 = vmatpush2.msra.mxu0 0.0
    %158 = vmatprep.subr.mxu0 0.0
    %159 = vmatpush2.msra.mxu0 0.0
    %160 = vmatprep.subr.mxu0 0.0
    %161 = vmatpush2.msra.mxu0 0.0
    %162 = vmatprep.subr.mxu0 0.0
    %163 = vmatpush2.msra.mxu0 0.0
    %164 = vmatprep.subr.mxu0 0.0
    %165 = vmatpush2.msra.mxu0 0.0
    %166 = vmatprep.subr.mxu0 0.0
    %167 = vmatpush2.msra.mxu0 0.0
    %168 = vmatprep.subr.mxu0 0.0
    %169 = vmatpush2.msra.mxu0 0.0
    %170 = vmatprep.subr.mxu0 0.0
    %171 = vmatpush2.msra.mxu0 0.0
    %172 = vmatprep.subr.mxu0 0.0
    %173 = vmatpush2.msra.mxu0 0.0
    %174 = vmatprep.subr.mxu0 0.0
    %175 = vmatpush2.msra.mxu0 0.0
    %176 = vmatprep.subr.mxu0 0.0
    %177 = vmatpush2.msra.mxu0 0.0
    %178 = vmatprep.subr.mxu0 0.0
    %179 = vmatpush2.msra.mxu0 0.0
    %180 = vmatprep.subr.mxu0 0.0
    %181 = vmatpush2.msra.mxu0 0.0
    %182 = vmatprep.subr.mxu0 0.0
    %183 = vmatpush2.msra.mxu0 0.0
    %184 = vmatprep.subr.mxu0 0.0
    %185 = vmatpush2.msra.mxu0 0.0
    %186 = vmatprep.mubr.f32.mxu0 0.0
    %187 = vmatmul.mubr.f32.gmra.mxu0 %v104
    %v188 = vpop.f32.mrf.mxu0
    %v189 = vadd.f32 0.0, %v188
    %v190 = vpop.f32.mrf.mxu0
    %191 = vdwg.mxu0
    %v192 = vadd.f32 %v105, %v189
    %193 = vst [vmem:[#allocation7] sm:$0xff] %v192
    // Predicated region
    $region22: #{tpu_custom_call.1} parent=1 // pred_check
      %p194 = pneg %p38
    $region23: #{tpu_custom_call.1} parent=1 // pred_check_branch
      %196 = sbr.rel (%p194) target = $region25
    $region24: #{tpu_custom_call.1} parent=1 // pred_region
      %v197 = vld [vmem:[#allocation7] sm:$0xff]
      %v198 = vmul.f32 %v197, 0.125
      %199 = vst [vmem:[#allocation7] sm:$0xff] %v198
    $region25: #{tpu_custom_call.1} parent=1 // pred_fallthru
      _
    // Predicated region
    $region26: #{tpu_custom_call.1} parent=1 // pred_check
      _
    $region27: #{tpu_custom_call.1} parent=1 // pred_check_branch
      %201 = sbr.rel (0) target = $region29
    $region28: #{tpu_custom_call.1} parent=1 // pred_region
      %s203 = ssub.s32 128, 128
      %204 = vsyncadd [#allocation4], %s203
      %s206 = sshll.u32 [#allocation7], 4
      %s207 = int_to_ptr.vmem [resolvable:$true] %s206
      %209 = dma.vmem_to_hbm [thread:$0]  %s207, 128, %s2, [#allocation4]
    $region29: #{tpu_custom_call.1} parent=1 // pred_fallthru
      _
    // Predicated region
    $region30: #{tpu_custom_call.1} parent=1 // pred_check
      _
    $region31: #{tpu_custom_call.1} parent=1 // pred_check_branch
      %211 = sbr.rel (0) target = $region33
    $region32: #{tpu_custom_call.1} parent=1 // pred_region
      %212 = dma.done [#allocation4], 128
    $region33: #{tpu_custom_call.1} parent=1 // pred_fallthru
      _
    %213 = vsyncpa [#allocation3], 1
    %214 = vsyncpa [#allocation6], 1
    %215 = vsyncpa [#allocation4], 1

</llo_original>
